<compile_context>
chip_gen: v7x
topology: tpu7x:2x2x1
jax: 0.10.0
libtpu: 0.0.40
codegen_flags: <defaults>
</compile_context>

<pallas_src>
import jax
import jax.numpy as jnp
from jax.experimental import pallas as pl
from jax.experimental.pallas import tpu as pltpu

LN_EPS = 1e-5
_LANE = 128


def _round_up(v, m):
    return -(-v // m) * m


def _sublane(dtype):
    # f32 -> 8, bf16 -> 16, int8/fp8 -> 32 rows per packed sublane group.
    return max(8, 32 // jnp.dtype(dtype).itemsize)


def _vmem_capacity_bytes():
    try:
        return int(pltpu.get_tpu_info().vmem_capacity_bytes)
    except Exception:
        return 64 * 1024 * 1024  # conservative fallback (v7x-sized VMEM)


def _choose_tiling(M, D, BN_pad, x_dtype, w_dtype):
    """Pick (tile_m, vmem_limit_bytes), generation-aware via VMEM capacity."""
    sub = _sublane(x_dtype)
    x_item = jnp.dtype(x_dtype).itemsize
    w_item = jnp.dtype(w_dtype).itemsize

    vmem_cap = _vmem_capacity_bytes()
    big_vmem = vmem_cap >= 100 * 1024 * 1024        # v5e / v6e (128 MiB parts)
    if big_vmem:
        budget = 64 * 1024 * 1024
        row_cap = 2048
        vmem_limit = 100 * 1024 * 1024
    else:                                           # v7x-like (64 MiB per TC)
        budget = 24 * 1024 * 1024
        row_cap = 1024
        vmem_limit = 48 * 1024 * 1024

    # Grid-resident weights/biases are double-buffered by default; reserve them
    # so large-D configs don't overshoot VMEM (v7x risk).
    weight_bytes = 2 * (2 * D * BN_pad + BN_pad + 3 * D) * w_item
    budget = max(budget - weight_bytes, 4 * 1024 * 1024)

    # Per-row cost: double-buffered x tile + out tile, plus f32 intermediates
    # (x/xn/up in f32 and the lane-dense `down` block).
    per_row = 2 * 2 * D * x_item + (3 * D + BN_pad) * 4
    tile = (budget // per_row) // sub * sub
    tile = max(sub, min(row_cap, tile))

    if M <= tile:
        # Single grid step: a block whose first dim equals the full array dim
        # is always legal (no sublane-multiple requirement).
        return M, vmem_limit

    n_steps = -(-M // tile)
    if (not big_vmem) and (n_steps % 2 == 1):
        # v7x: 2 TensorCores share the ("parallel",) row axis -- prefer an even
        # number of steps, but never shrink the tile below ~512 rows.
        even_tile = _round_up(-(-M // (n_steps + 1)), sub)
        if even_tile >= 512:
            tile = even_tile
    return tile, vmem_limit


def prepare_adapter_params(params):
    """One-time parameter prep (keep OUT of the per-call path):
       * reshape 1-D vectors to (1, n) rows,
       * zero-pad the bottleneck dim BN to a multiple of 128 (lane-dense
         `down` intermediate; numerically identical)."""
    D, BN = params["w_down"].shape
    BN_pad = _round_up(BN, _LANE)
    w_down = params["w_down"]
    b_down = params["b_down"].reshape(1, BN)
    w_up = params["w_up"]
    if BN_pad != BN:
        w_down = jnp.pad(w_down, ((0, 0), (0, BN_pad - BN)))
        b_down = jnp.pad(b_down, ((0, 0), (0, BN_pad - BN)))
        w_up = jnp.pad(w_up, ((0, BN_pad - BN), (0, 0)))
    return {
        "ln_w": params["ln_w"].reshape(1, D),
        "ln_b": params["ln_b"].reshape(1, D),
        "w_down": w_down,           # (D, BN_pad)
        "b_down": b_down,           # (1, BN_pad)
        "w_up": w_up,               # (BN_pad, D)
        "b_up": params["b_up"].reshape(1, D),
    }


def adapter_kernel(x_ref, scale_ref, lnw_ref, lnb_ref, wd_ref, bd_ref,
                   wu_ref, bu_ref, o_ref):
    # ---- load x once; it serves both LayerNorm input and the residual ----
    x = x_ref[...].astype(jnp.float32)

    # ---- LayerNorm over last dim (adapter_layernorm_option == 'in') ----
    mean = jnp.mean(x, axis=-1, keepdims=True)
    xc = x - mean
    var = jnp.mean(xc * xc, axis=-1, keepdims=True)
    xn = xc * jax.lax.rsqrt(var + LN_EPS)
    xn = xn * lnw_ref[...].astype(jnp.float32) + lnb_ref[...].astype(jnp.float32)

    # ---- down projection + ReLU (dropout p=0.0 in eval -> identity) ----
    wd = wd_ref[...]
    down = jnp.dot(xn.astype(wd.dtype), wd, preferred_element_type=jnp.float32)
    down = jnp.maximum(down + bd_ref[...].astype(jnp.float32), 0.0)

    # ---- up projection, scale (SMEM scalar), residual add ----
    wu = wu_ref[...]
    up = jnp.dot(down.astype(wu.dtype), wu, preferred_element_type=jnp.float32)
    up = (up + bu_ref[...].astype(jnp.float32)) * scale_ref[0, 0]

    o_ref[...] = (up + x).astype(o_ref.dtype)


def adapter_forward(x, prepared, *, scale=1.0, tile_m=None, vmem_limit_bytes=None):
    """x: (B, N, D).  `prepared` = prepare_adapter_params(params).
       `scale` may be a Python float or a traced scalar (learnable_scalar)."""
    B, N, D = x.shape
    BN_pad = prepared["w_down"].shape[1]
    M = B * N
    x2 = x.reshape(M, D)

    auto_tile, auto_limit = _choose_tiling(M, D, BN_pad, x.dtype,
                                           prepared["w_down"].dtype)
    if tile_m is None:
        tile_m = auto_tile
    if vmem_limit_bytes is None:
        vmem_limit_bytes = auto_limit

    sub = _sublane(x.dtype)
    if tile_m >= M:
        tile_m = M                                   # single, full-extent block
    else:
        tile_m = max(sub, (tile_m // sub) * sub)     # multi-block: sublane-aligned

    grid = (pl.cdiv(M, tile_m),)                     # ragged last block allowed

    scale_arr = jnp.asarray(scale, dtype=jnp.float32).reshape(1, 1)

    row_spec = pl.BlockSpec((tile_m, D), lambda i: (i, 0))
    full = lambda r, c: pl.BlockSpec((r, c), lambda i: (0, 0))
    smem_scalar = pl.BlockSpec(memory_space=pltpu.MemorySpace.SMEM)

    # TODO(synk): for tiny D (< 128, not a multiple of 128) the output store is
    # lane-masked; typical transformer D (768/1024/...) is already lane-dense.
    out = pl.pallas_call(
        adapter_kernel,
        out_shape=jax.ShapeDtypeStruct((M, D), x.dtype),
        grid_spec=pltpu.PrefetchScalarGridSpec(
            num_scalar_prefetch=0,
            grid=grid,
            in_specs=[
                row_spec,                    # x tile (also the residual)
                smem_scalar,                 # scale (1,1) in SMEM
                full(1, D),                  # ln weight
                full(1, D),                  # ln bias
                full(D, BN_pad),             # W_down (transposed, BN padded)
                full(1, BN_pad),             # b_down
                full(BN_pad, D),             # W_up (transposed, BN padded)
                full(1, D),                  # b_up
            ],
            out_specs=row_spec,
        ),
        compiler_params=pltpu.CompilerParams(
            dimension_semantics=("parallel",),
            vmem_limit_bytes=vmem_limit_bytes),
    )(x2, scale_arr, prepared["ln_w"], prepared["ln_b"],
      prepared["w_down"], prepared["b_down"], prepared["w_up"], prepared["b_up"])

    return out.reshape(B, N, D)


def adapter_reference(x, params, *, scale=1.0):
    """Pure-JAX reference matching the PyTorch module (eval mode)."""
    mean = jnp.mean(x, axis=-1, keepdims=True)
    var = jnp.mean((x - mean) ** 2, axis=-1, keepdims=True)
    xn = (x - mean) / jnp.sqrt(var + LN_EPS)
    xn = xn * params["ln_w"] + params["ln_b"]
    down = jnp.maximum(xn @ params["w_down"] + params["b_down"], 0.0)
    up = (down @ params["w_up"] + params["b_up"]) * scale
    return up + x


if __name__ == "__main__":
    # Small shapes consistent with the module: d_model=32, bottleneck=8,
    # batch=2, seq=8 -> x: (2, 8, 32)
    B, N, D, BOTTLENECK = 2, 8, 32, 8

    key = jax.random.PRNGKey(0)
    kx, kd, ku, kbd, kbu = jax.random.split(key, 5)

    x = jax.random.normal(kx, (B, N, D), dtype=jnp.float32)

    # Deterministic synthetic parameter init (nonzero so the kernel path is
    # exercised; the real 'lora' init zeroes up_proj, which would make the
    # output trivially equal to the residual).
    params = {
        "ln_w": jnp.ones((D,), jnp.float32),            # nn.LayerNorm default
        "ln_b": jnp.zeros((D,), jnp.float32),
        "w_down": jax.random.normal(kd, (D, BOTTLENECK), jnp.float32) * 0.1,
        "b_down": jax.random.normal(kbd, (BOTTLENECK,), jnp.float32) * 0.01,
        "w_up": jax.random.normal(ku, (BOTTLENECK, D), jnp.float32) * 0.1,
        "b_up": jax.random.normal(kbu, (D,), jnp.float32) * 0.01,
    }
    prepared = prepare_adapter_params(params)           # one-time prep

    # adapter_scalar='1.0'
    out = jax.block_until_ready(adapter_forward(x, prepared, scale=1.0))
    ref = adapter_reference(x, params, scale=1.0)
    assert out.shape == (B, N, D)
    assert jnp.allclose(out, ref, atol=1e-4, rtol=1e-4)

    # Exercise the ragged-last-block path (M=111 not divisible by tile_m=64)
    # and a non-trivial scale (SMEM scalar path).
    B2, N2 = 3, 37
    x_big = jax.random.normal(jax.random.PRNGKey(1), (B2, N2, D), jnp.float32)
    out_big = jax.block_until_ready(
        adapter_forward(x_big, prepared, scale=0.5, tile_m=64))
    ref_big = adapter_reference(x_big, params, scale=0.5)
    assert jnp.allclose(out_big, ref_big, atol=1e-4, rtol=1e-4)

    print("KERNEL_OK")
</pallas_src>

<mosaic_0001>
module attributes {stable_mosaic.version = 11 : i64} {
  func.func @adapter_kernel(%arg0: i32, %arg1: memref<16x32xf32, #tpu.memory_space<vmem>>, %arg2: memref<1x1xf32, #tpu.memory_space<smem>>, %arg3: memref<1x32xf32, #tpu.memory_space<vmem>>, %arg4: memref<1x32xf32, #tpu.memory_space<vmem>>, %arg5: memref<32x128xf32, #tpu.memory_space<vmem>>, %arg6: memref<1x128xf32, #tpu.memory_space<vmem>>, %arg7: memref<128x32xf32, #tpu.memory_space<vmem>>, %arg8: memref<1x32xf32, #tpu.memory_space<vmem>>, %arg9: memref<16x32xf32, #tpu.memory_space<vmem>>) attributes {dimension_semantics = [#tpu.dimension_semantics<parallel>], iteration_bounds = array<i64: 1>, scalar_prefetch = 0 : i64, scratch_operands = 0 : i64, tpu.core_type = #tpu.core_type<tc>, window_params = [{transform_indices = @transform_0, window_bounds = array<i64: 16, 32>}, {transform_indices = @transform_1, window_bounds = array<i64: 1, 1>}, {pipeline_mode = #tpu.pipeline_mode<synchronous>, transform_indices = @transform_2, window_bounds = array<i64: 1, 32>}, {pipeline_mode = #tpu.pipeline_mode<synchronous>, transform_indices = @transform_3, window_bounds = array<i64: 1, 32>}, {pipeline_mode = #tpu.pipeline_mode<synchronous>, transform_indices = @transform_4, window_bounds = array<i64: 32, 128>}, {pipeline_mode = #tpu.pipeline_mode<synchronous>, transform_indices = @transform_5, window_bounds = array<i64: 1, 128>}, {pipeline_mode = #tpu.pipeline_mode<synchronous>, transform_indices = @transform_6, window_bounds = array<i64: 128, 32>}, {pipeline_mode = #tpu.pipeline_mode<synchronous>, transform_indices = @transform_7, window_bounds = array<i64: 1, 32>}, {transform_indices = @transform_8, window_bounds = array<i64: 16, 32>}]} {
    %c0 = arith.constant 0 : index
    %c0_0 = arith.constant 0 : index
    %0 = vector.load %arg1[%c0, %c0_0] : memref<16x32xf32, #tpu.memory_space<vmem>>, vector<16x32xf32>
    %cst = arith.constant dense<0.000000e+00> : vector<16xf32>
    %1 = vector.multi_reduction <add>, %0, %cst [1] : vector<16x32xf32> to vector<16xf32>
    %2 = vector.shape_cast %1 : vector<16xf32> to vector<16x1xf32>
    %cst_1 = arith.constant 3.200000e+01 : f32
    %3 = vector.broadcast %cst_1 : f32 to vector<16x1xf32>
    %4 = arith.divf %2, %3 : vector<16x1xf32>
    %5 = vector.broadcast %4 : vector<16x1xf32> to vector<16x32xf32>
    %6 = arith.subf %0, %5 : vector<16x32xf32>
    %7 = arith.mulf %6, %6 : vector<16x32xf32>
    %cst_2 = arith.constant dense<0.000000e+00> : vector<16xf32>
    %8 = vector.multi_reduction <add>, %7, %cst_2 [1] : vector<16x32xf32> to vector<16xf32>
    %9 = vector.shape_cast %8 : vector<16xf32> to vector<16x1xf32>
    %cst_3 = arith.constant 3.200000e+01 : f32
    %10 = vector.broadcast %cst_3 : f32 to vector<16x1xf32>
    %11 = arith.divf %9, %10 : vector<16x1xf32>
    %cst_4 = arith.constant 9.99999974E-6 : f32
    %12 = vector.broadcast %cst_4 : f32 to vector<16x1xf32>
    %13 = arith.addf %11, %12 : vector<16x1xf32>
    %14 = math.rsqrt %13 : vector<16x1xf32>
    %15 = vector.broadcast %14 : vector<16x1xf32> to vector<16x32xf32>
    %16 = arith.mulf %6, %15 : vector<16x32xf32>
    %c0_5 = arith.constant 0 : index
    %c0_6 = arith.constant 0 : index
    %17 = vector.load %arg3[%c0_5, %c0_6] : memref<1x32xf32, #tpu.memory_space<vmem>>, vector<1x32xf32>
    %18 = vector.broadcast %17 : vector<1x32xf32> to vector<16x32xf32>
    %19 = arith.mulf %16, %18 : vector<16x32xf32>
    %c0_7 = arith.constant 0 : index
    %c0_8 = arith.constant 0 : index
    %20 = vector.load %arg4[%c0_7, %c0_8] : memref<1x32xf32, #tpu.memory_space<vmem>>, vector<1x32xf32>
    %21 = vector.broadcast %20 : vector<1x32xf32> to vector<16x32xf32>
    %22 = arith.addf %19, %21 : vector<16x32xf32>
    %c0_9 = arith.constant 0 : index
    %c0_10 = arith.constant 0 : index
    %23 = vector.load %arg5[%c0_9, %c0_10] : memref<32x128xf32, #tpu.memory_space<vmem>>, vector<32x128xf32>
    %cst_11 = arith.constant dense<0.000000e+00> : vector<16x128xf32>
    %24 = tpu.matmul %22, %23, %cst_11 {dimension_numbers = #tpu.dot_dimension_numbers<[1], [0], [0], [1], [0, 0, 1, 1], [], []>} : vector<16x32xf32>, vector<32x128xf32>, vector<16x128xf32> -> vector<16x128xf32>
    %c0_12 = arith.constant 0 : index
    %c0_13 = arith.constant 0 : index
    %25 = vector.load %arg6[%c0_12, %c0_13] : memref<1x128xf32, #tpu.memory_space<vmem>>, vector<1x128xf32>
    %26 = vector.broadcast %25 : vector<1x128xf32> to vector<16x128xf32>
    %27 = arith.addf %24, %26 : vector<16x128xf32>
    %cst_14 = arith.constant 0.000000e+00 : f32
    %28 = vector.broadcast %cst_14 : f32 to vector<16x128xf32>
    %29 = arith.maximumf %27, %28 : vector<16x128xf32>
    %c0_15 = arith.constant 0 : index
    %c0_16 = arith.constant 0 : index
    %30 = vector.load %arg7[%c0_15, %c0_16] : memref<128x32xf32, #tpu.memory_space<vmem>>, vector<128x32xf32>
    %cst_17 = arith.constant dense<0.000000e+00> : vector<16x32xf32>
    %31 = tpu.matmul %29, %30, %cst_17 {dimension_numbers = #tpu.dot_dimension_numbers<[1], [0], [0], [1], [0, 0, 1, 1], [], []>} : vector<16x128xf32>, vector<128x32xf32>, vector<16x32xf32> -> vector<16x32xf32>
    %c0_18 = arith.constant 0 : index
    %c0_19 = arith.constant 0 : index
    %32 = vector.load %arg8[%c0_18, %c0_19] : memref<1x32xf32, #tpu.memory_space<vmem>>, vector<1x32xf32>
    %33 = vector.broadcast %32 : vector<1x32xf32> to vector<16x32xf32>
    %34 = arith.addf %31, %33 : vector<16x32xf32>
    %c0_20 = arith.constant 0 : index
    %c0_21 = arith.constant 0 : index
    %35 = memref.load %arg2[%c0_20, %c0_21] : memref<1x1xf32, #tpu.memory_space<smem>>
    %36 = vector.broadcast %35 : f32 to vector<16x32xf32>
    %37 = arith.mulf %34, %36 : vector<16x32xf32>
    %38 = arith.addf %37, %0 : vector<16x32xf32>
    %c0_22 = arith.constant 0 : index
    %c0_23 = arith.constant 0 : index
    %39 = vector.load %arg9[%c0_22, %c0_23] : memref<16x32xf32, #tpu.memory_space<vmem>>, vector<16x32xf32>
    tpu.vector_store %arg9[%c0_22, %c0_23], %38 {strides = array<i32>} : memref<16x32xf32, #tpu.memory_space<vmem>>, vector<16x32xf32>,
    return
  }
  func.func @transform_0(%arg0: i32) -> (i32, i32) {
    %c0_i32 = arith.constant 0 : i32
    %c0_i32_0 = arith.constant 0 : i32
    return %arg0, %c0_i32 : i32, i32
  }
  func.func @transform_1(%arg0: i32) -> (i32, i32) {
    %c0_i32 = arith.constant 0 : i32
    %c0_i32_0 = arith.constant 0 : i32
    %c0_i32_1 = arith.constant 0 : i32
    return %c0_i32, %c0_i32_0 : i32, i32
  }
  func.func @transform_2(%arg0: i32) -> (i32, i32) {
    %c0_i32 = arith.constant 0 : i32
    %c0_i32_0 = arith.constant 0 : i32
    %c0_i32_1 = arith.constant 0 : i32
    return %c0_i32, %c0_i32_0 : i32, i32
  }
  func.func @transform_3(%arg0: i32) -> (i32, i32) {
    %c0_i32 = arith.constant 0 : i32
    %c0_i32_0 = arith.constant 0 : i32
    %c0_i32_1 = arith.constant 0 : i32
    return %c0_i32, %c0_i32_0 : i32, i32
  }
  func.func @transform_4(%arg0: i32) -> (i32, i32) {
    %c0_i32 = arith.constant 0 : i32
    %c0_i32_0 = arith.constant 0 : i32
    %c0_i32_1 = arith.constant 0 : i32
    return %c0_i32, %c0_i32_0 : i32, i32
  }
  func.func @transform_5(%arg0: i32) -> (i32, i32) {
    %c0_i32 = arith.constant 0 : i32
    %c0_i32_0 = arith.constant 0 : i32
    %c0_i32_1 = arith.constant 0 : i32
    return %c0_i32, %c0_i32_0 : i32, i32
  }
  func.func @transform_6(%arg0: i32) -> (i32, i32) {
    %c0_i32 = arith.constant 0 : i32
    %c0_i32_0 = arith.constant 0 : i32
    %c0_i32_1 = arith.constant 0 : i32
    return %c0_i32, %c0_i32_0 : i32, i32
  }
  func.func @transform_7(%arg0: i32) -> (i32, i32) {
    %c0_i32 = arith.constant 0 : i32
    %c0_i32_0 = arith.constant 0 : i32
    %c0_i32_1 = arith.constant 0 : i32
    return %c0_i32, %c0_i32_0 : i32, i32
  }
  func.func @transform_8(%arg0: i32) -> (i32, i32) {
    %c0_i32 = arith.constant 0 : i32
    %c0_i32_0 = arith.constant 0 : i32
    return %arg0, %c0_i32 : i32, i32
  }
}

</mosaic_0001>

<llo_original>
// kernel: tpu_custom_call.1
$region0: #{tpu_custom_call.1}
  #allocation0 [shape = 'u32[]', space=smem, size = 0x4, offset = 0x4, fixed_abs, tag = 'smem constant byte address 0x4 - core index']
  #allocation1 [shape = 'u32[144,128]{1,0:T(1,128)}', space=vmem, size = 0x12000, scoped, tag = 'internal scratch']
  #allocation2 [shape = 'f32[1,1]{1,0:T(1,128)S(6)}', space=smem, size = 0x200, scoped, tag = 'scoped memory for tpu_custom_call.1']
  %s0 = inlined_call_operand.vmem [shape: f32[16,32], index: 0, kind: input, shape index: {}]
  %s1 = inlined_call_operand.<no memory space> [shape: f32[1,1], index: 1, kind: input, shape index: {}]
  %s2 = inlined_call_operand.vmem [shape: f32[1,32], index: 2, kind: input, shape index: {}]
  %s3 = inlined_call_operand.vmem [shape: f32[1,32], index: 3, kind: input, shape index: {}]
  %s4 = inlined_call_operand.vmem [shape: f32[32,128], index: 4, kind: input, shape index: {}]
  %s5 = inlined_call_operand.vmem [shape: f32[1,128], index: 5, kind: input, shape index: {}]
  %s6 = inlined_call_operand.vmem [shape: f32[128,32], index: 6, kind: input, shape index: {}]
  %s7 = inlined_call_operand.vmem [shape: f32[1,32], index: 7, kind: input, shape index: {}]
  %s8 = inlined_call_operand.hbm [shape: f32[16,32], index: 8, kind: output, shape index: {}]
  %s9 = sld [smem:[#allocation0]]
  $region42: #{tpu_custom_call.1} parent=0
    _
  %s11 = ssub.s32 1, %s9
  %s12 = scalar_select 0, %s11, %s9
  %13 = sst [smem:[#allocation2]] %s1
  $region1: #{tpu_custom_call.1} parent=0
    #allocation3 [shape = 'u8[8192]{0}', space=vmem, size = 0x2000, scoped, tag = 'output window, operand 0, single buffered']
    #allocation4 [shape = 's32[1]{0}', space=sflag, size = 0x4, scoped, tag = 'scoped memory for tpu_custom_call.1']
    %14 = vsyncpa [#allocation4], 0
    // Predicated region
    $region2: #{tpu_custom_call.1} parent=1 // pred_check
      _
    $region3: #{tpu_custom_call.1} parent=1 // pred_check_branch
      %16 = sbr.rel (0) target = $region5
    $region4: #{tpu_custom_call.1} parent=1 // pred_region
      _
    $region5: #{tpu_custom_call.1} parent=1 // pred_fallthru
      _
    // Predicated region
    $region6: #{tpu_custom_call.1} parent=1 // pred_check
      _
    $region7: #{tpu_custom_call.1} parent=1 // pred_check_branch
      %18 = sbr.rel (0) target = $region9
    $region8: #{tpu_custom_call.1} parent=1 // pred_region
      _
    $region9: #{tpu_custom_call.1} parent=1 // pred_fallthru
      _
    // Predicated region
    $region10: #{tpu_custom_call.1} parent=1 // pred_check
      _
    $region11: #{tpu_custom_call.1} parent=1 // pred_check_branch
      %20 = sbr.rel (0) target = $region13
    $region12: #{tpu_custom_call.1} parent=1 // pred_region
      _
    $region13: #{tpu_custom_call.1} parent=1 // pred_fallthru
      _
    // Predicated region
    $region14: #{tpu_custom_call.1} parent=1 // pred_check
      _
    $region15: #{tpu_custom_call.1} parent=1 // pred_check_branch
      %22 = sbr.rel (0) target = $region17
    $region16: #{tpu_custom_call.1} parent=1 // pred_region
      _
    $region17: #{tpu_custom_call.1} parent=1 // pred_fallthru
      _
    // Predicated region
    $region18: #{tpu_custom_call.1} parent=1 // pred_check
      _
    $region19: #{tpu_custom_call.1} parent=1 // pred_check_branch
      %24 = sbr.rel (0) target = $region21
    $region20: #{tpu_custom_call.1} parent=1 // pred_region
      _
    $region21: #{tpu_custom_call.1} parent=1 // pred_fallthru
      _
    // Predicated region
    $region22: #{tpu_custom_call.1} parent=1 // pred_check
      _
    $region23: #{tpu_custom_call.1} parent=1 // pred_check_branch
      %26 = sbr.rel (0) target = $region25
    $region24: #{tpu_custom_call.1} parent=1 // pred_region
      _
    $region25: #{tpu_custom_call.1} parent=1 // pred_fallthru
      _
    // Predicated region
    $region26: #{tpu_custom_call.1} parent=1 // pred_check
      _
    $region27: #{tpu_custom_call.1} parent=1 // pred_check_branch
      %28 = sbr.rel (0) target = $region29
    $region28: #{tpu_custom_call.1} parent=1 // pred_region
      _
    $region29: #{tpu_custom_call.1} parent=1 // pred_fallthru
      _
    // Predicated region
    $region30: #{tpu_custom_call.1} parent=1 // pred_check
      _
    $region31: #{tpu_custom_call.1} parent=1 // pred_check_branch
      %30 = sbr.rel (0) target = $region33
    $region32: #{tpu_custom_call.1} parent=1 // pred_region
      _
    $region33: #{tpu_custom_call.1} parent=1 // pred_fallthru
      _
    %v31 = vld [vmem:[%s0] sm:$0xff]
    %v32 = vld [vmem:[%s0 + $0x8] sm:$0xff]
    %vm33 = vcmask 261120
    %v34 = vsel %vm33, %v31, 0.0
    %35 = vadd.xlane.f32.xlu0 %v34
    %v36 = vpop.xlane.xlu0 %35
    %v37 = vsel %vm33, %v32, 0.0
    %38 = vadd.xlane.f32.xlu0 %v37
    %v39 = vpop.xlane.xlu0 %38
    %v40 = vrcp.pop 32.0
    %v41 = vmul.f32 %v36, %v40
    %v42 = vmul.f32 %v39, %v40
    %v43 = vsub.f32 %v31, %v41
    %v44 = vsub.f32 %v32, %v42
    %v45 = vmul.f32 %v43, %v43
    %v46 = vmul.f32 %v44, %v44
    %v47 = vsel %vm33, %v45, 0.0
    %48 = vadd.xlane.f32.xlu0 %v47
    %v49 = vpop.xlane.xlu0 %48
    %v50 = vsel %vm33, %v46, 0.0
    %51 = vadd.xlane.f32.xlu0 %v50
    %v52 = vpop.xlane.xlu0 %51
    %v53 = vmul.f32 %v49, %v40
    %v54 = vmul.f32 %v52, %v40
    %v55 = vadd.f32 %v53, 1e-05
    %v56 = vadd.f32 %v54, 1e-05
    %v57 = vrsqrt.pop %v55
    %v58 = vrsqrt.pop %v56
    %v59 = vmul.f32 %v43, %v57
    %v60 = vmul.f32 %v44, %v58
    %v61 = vld [vmem:[%s2] sm:$0x1]
    %v63 = vlaneseq
    %v64 = vshrl.u32 %v63, 7
    %v65 = vsub.s32 0, %v64
    %v66 = vrot.slane %v61, %v65
    %v68 = vmul.f32 %v59, %v66
    %v69 = vmul.f32 %v60, %v66
    %v70 = vld [vmem:[%s3] sm:$0x1]
    %v72 = vlaneseq
    %v73 = vshrl.u32 %v72, 7
    %v74 = vsub.s32 0, %v73
    %v75 = vrot.slane %v70, %v74
    %v77 = vadd.f32 %v68, %v75
    %v78 = vadd.f32 %v69, %v75
    %v79 = vld [vmem:[%s4] sm:$0xff]
    %v80 = vld [vmem:[%s4 + $0x8] sm:$0xff]
    %v81 = vld [vmem:[%s4 + $0x10] sm:$0xff]
    %v82 = vld [vmem:[%s4 + $0x18] sm:$0xff]
    %v83 = vld [vmem:[%s5] sm:$0x1]
    %v85 = vlaneseq
    %v86 = vshrl.u32 %v85, 7
    %v87 = vsub.s32 0, %v86
    %v88 = vrot.slane %v83, %v87
    %v91 = vsel %vm33, %v77, 0
    %v94 = vsel %vm33, %v78, 0
    %96 = vmatprep.subr.mxu0 0.0
    %97 = vmatpush1.msra.mxu0 %v79
    %98 = vmatprep.subr.mxu0 0.0
    %99 = vmatpush1.msra.mxu0 %v80
    %100 = vmatprep.subr.mxu0 0.0
    %101 = vmatpush1.msra.mxu0 %v81
    %102 = vmatprep.subr.mxu0 0.0
    %103 = vmatpush1.msra.mxu0 %v82
    %104 = vmatprep.subr.mxu0 0.0
    %105 = vmatpush1.msra.mxu0 0.0
    %106 = vmatprep.subr.mxu0 0.0
    %107 = vmatpush1.msra.mxu0 0.0
    %108 = vmatprep.subr.mxu0 0.0
    %109 = vmatpush1.msra.mxu0 0.0
    %110 = vmatprep.subr.mxu0 0.0
    %111 = vmatpush1.msra.mxu0 0.0
    %112 = vmatprep.subr.mxu0 0.0
    %113 = vmatpush1.msra.mxu0 0.0
    %114 = vmatprep.subr.mxu0 0.0
    %115 = vmatpush1.msra.mxu0 0.0
    %116 = vmatprep.subr.mxu0 0.0
    %117 = vmatpush1.msra.mxu0 0.0
    %118 = vmatprep.subr.mxu0 0.0
    %119 = vmatpush1.msra.mxu0 0.0
    %120 = vmatprep.subr.mxu0 0.0
    %121 = vmatpush1.msra.mxu0 0.0
    %122 = vmatprep.subr.mxu0 0.0
    %123 = vmatpush1.msra.mxu0 0.0
    %124 = vmatprep.subr.mxu0 0.0
    %125 = vmatpush1.msra.mxu0 0.0
    %126 = vmatprep.subr.mxu0 0.0
    %127 = vmatpush1.msra.mxu0 0.0
    %128 = vmatprep.subr.mxu0 0.0
    %129 = vmatpush1.msra.mxu0 0.0
    %130 = vmatprep.subr.mxu0 0.0
    %131 = vmatpush1.msra.mxu0 0.0
    %132 = vmatprep.subr.mxu0 0.0
    %133 = vmatpush1.msra.mxu0 0.0
    %134 = vmatprep.subr.mxu0 0.0
    %135 = vmatpush1.msra.mxu0 0.0
    %136 = vmatprep.subr.mxu0 0.0
    %137 = vmatpush1.msra.mxu0 0.0
    %138 = vmatprep.subr.mxu0 0.0
    %139 = vmatpush1.msra.mxu0 0.0
    %140 = vmatprep.subr.mxu0 0.0
    %141 = vmatpush1.msra.mxu0 0.0
    %142 = vmatprep.subr.mxu0 0.0
    %143 = vmatpush1.msra.mxu0 0.0
    %144 = vmatprep.subr.mxu0 0.0
    %145 = vmatpush1.msra.mxu0 0.0
    %146 = vmatprep.subr.mxu0 0.0
    %147 = vmatpush1.msra.mxu0 0.0
    %148 = vmatprep.subr.mxu0 0.0
    %149 = vmatpush1.msra.mxu0 0.0
    %150 = vmatprep.subr.mxu0 0.0
    %151 = vmatpush1.msra.mxu0 0.0
    %152 = vmatprep.subr.mxu0 0.0
    %153 = vmatpush1.msra.mxu0 0.0
    %154 = vmatprep.subr.mxu0 0.0
    %155 = vmatpush1.msra.mxu0 0.0
    %156 = vmatprep.subr.mxu0 0.0
    %157 = vmatpush1.msra.mxu0 0.0
    %158 = vmatprep.subr.mxu0 0.0
    %159 = vmatpush1.msra.mxu0 0.0
    %160 = vmatprep.mubr.f32.mxu0 0.0
    %161 = vmatmul.mubr.f32.gmra.mrb[0].mxu0 %v91
    %v162 = vpop.f32.mrb[0].mxu0
    %v163 = vadd.f32 %v88, %v162
    %v164 = vpop.f32.mrb[0].mxu0
    %165 = vmatprep.mubr.f32.mxu0 0.0
    %166 = vmatmul.mubr.f32.gmra.mrb[0].mxu0 %v94
    %v167 = vpop.f32.mrb[0].mxu0
    %v168 = vadd.f32 %v88, %v167
    %v169 = vpop.f32.mrb[0].mxu0
    %170 = vdwg.mxu0
    %v171 = vmax.f32 %v163, 0.0
    %v172 = vmax.f32 %v168, 0.0
    %v173 = vld [vmem:[%s6] sm:$0xff]
    %v174 = vld [vmem:[%s6 + $0x8] sm:$0xff]
    %v175 = vld [vmem:[%s6 + $0x10] sm:$0xff]
    %v176 = vld [vmem:[%s6 + $0x18] sm:$0xff]
    %v177 = vld [vmem:[%s6 + $0x20] sm:$0xff]
    %v178 = vld [vmem:[%s6 + $0x28] sm:$0xff]
    %v179 = vld [vmem:[%s6 + $0x30] sm:$0xff]
    %v180 = vld [vmem:[%s6 + $0x38] sm:$0xff]
    %v181 = vld [vmem:[%s6 + $0x40] sm:$0xff]
    %v182 = vld [vmem:[%s6 + $0x48] sm:$0xff]
    %v183 = vld [vmem:[%s6 + $0x50] sm:$0xff]
    %v184 = vld [vmem:[%s6 + $0x58] sm:$0xff]
    %v185 = vld [vmem:[%s6 + $0x60] sm:$0xff]
    %v186 = vld [vmem:[%s6 + $0x68] sm:$0xff]
    %v187 = vld [vmem:[%s6 + $0x70] sm:$0xff]
    %v188 = vld [vmem:[%s6 + $0x78] sm:$0xff]
    %v189 = vld [vmem:[%s7] sm:$0x1]
    %v191 = vlaneseq
    %v192 = vshrl.u32 %v191, 7
    %v193 = vsub.s32 0, %v192
    %v194 = vrot.slane %v189, %v193
    %196 = vmatprep.subr.mxu0 0.0
    %197 = vmatpush1.msra.mxu0 %v173
    %198 = vmatprep.subr.mxu0 0.0
    %199 = vmatpush1.msra.mxu0 %v174
    %200 = vmatprep.subr.mxu0 0.0
    %201 = vmatpush1.msra.mxu0 %v175
    %202 = vmatprep.subr.mxu0 0.0
    %203 = vmatpush1.msra.mxu0 %v176
    %204 = vmatprep.subr.mxu0 0.0
    %205 = vmatpush1.msra.mxu0 %v177
    %206 = vmatprep.subr.mxu0 0.0
    %207 = vmatpush1.msra.mxu0 %v178
    %208 = vmatprep.subr.mxu0 0.0
    %209 = vmatpush1.msra.mxu0 %v179
    %210 = vmatprep.subr.mxu0 0.0
    %211 = vmatpush1.msra.mxu0 %v180
    %212 = vmatprep.subr.mxu0 0.0
    %213 = vmatpush1.msra.mxu0 %v181
    %214 = vmatprep.subr.mxu0 0.0
    %215 = vmatpush1.msra.mxu0 %v182
    %216 = vmatprep.subr.mxu0 0.0
    %217 = vmatpush1.msra.mxu0 %v183
    %218 = vmatprep.subr.mxu0 0.0
    %219 = vmatpush1.msra.mxu0 %v184
    %220 = vmatprep.subr.mxu0 0.0
    %221 = vmatpush1.msra.mxu0 %v185
    %222 = vmatprep.subr.mxu0 0.0
    %223 = vmatpush1.msra.mxu0 %v186
    %224 = vmatprep.subr.mxu0 0.0
    %225 = vmatpush1.msra.mxu0 %v187
    %226 = vmatprep.subr.mxu0 0.0
    %227 = vmatpush1.msra.mxu0 %v188
    %228 = vmatprep.subr.mxu0 0.0
    %229 = vmatpush1.msra.mxu0 0.0
    %230 = vmatprep.subr.mxu0 0.0
    %231 = vmatpush1.msra.mxu0 0.0
    %232 = vmatprep.subr.mxu0 0.0
    %233 = vmatpush1.msra.mxu0 0.0
    %234 = vmatprep.subr.mxu0 0.0
    %235 = vmatpush1.msra.mxu0 0.0
    %236 = vmatprep.subr.mxu0 0.0
    %237 = vmatpush1.msra.mxu0 0.0
    %238 = vmatprep.subr.mxu0 0.0
    %239 = vmatpush1.msra.mxu0 0.0
    %240 = vmatprep.subr.mxu0 0.0
    %241 = vmatpush1.msra.mxu0 0.0
    %242 = vmatprep.subr.mxu0 0.0
    %243 = vmatpush1.msra.mxu0 0.0
    %244 = vmatprep.subr.mxu0 0.0
    %245 = vmatpush1.msra.mxu0 0.0
    %246 = vmatprep.subr.mxu0 0.0
    %247 = vmatpush1.msra.mxu0 0.0
    %248 = vmatprep.subr.mxu0 0.0
    %249 = vmatpush1.msra.mxu0 0.0
    %250 = vmatprep.subr.mxu0 0.0
    %251 = vmatpush1.msra.mxu0 0.0
    %252 = vmatprep.subr.mxu0 0.0
    %253 = vmatpush1.msra.mxu0 0.0
    %254 = vmatprep.subr.mxu0 0.0
    %255 = vmatpush1.msra.mxu0 0.0
    %256 = vmatprep.subr.mxu0 0.0
    %257 = vmatpush1.msra.mxu0 0.0
    %258 = vmatprep.subr.mxu0 0.0
    %259 = vmatpush1.msra.mxu0 0.0
    %260 = vmatprep.mubr.f32.mxu0 0.0
    %261 = vmatmul.mubr.f32.gmra.mrb[0].mxu0 %v171
    %v262 = vpop.f32.mrb[0].mxu0
    %v263 = vadd.f32 %v194, %v262
    %v264 = vpop.f32.mrb[0].mxu0
    %265 = vmatprep.mubr.f32.mxu0 0.0
    %266 = vmatmul.mubr.f32.gmra.mrb[0].mxu0 %v172
    %v267 = vpop.f32.mrb[0].mxu0
    %v268 = vadd.f32 %v194, %v267
    %v269 = vpop.f32.mrb[0].mxu0
    %270 = vdwg.mxu0
    %s271 = sld [smem:[#allocation2]]
    %v272 = vstv %s271
    %v273 = vmul.f32 %v263, %v272
    %v274 = vmul.f32 %v268, %v272
    %v275 = vadd.f32 %v273, %v31
    %v276 = vadd.f32 %v274, %v32
    %277 = vst.msk [vmem:[#allocation3] sm:$0xff] %vm33, %v275
    %278 = vst.msk [vmem:[#allocation3 + $0x8] sm:$0xff] %vm33, %v276
    // Predicated region
    $region34: #{tpu_custom_call.1} parent=1 // pred_check
      _
    $region35: #{tpu_custom_call.1} parent=1 // pred_check_branch
      %280 = sbr.rel (0) target = $region37
    $region36: #{tpu_custom_call.1} parent=1 // pred_region
      %s282 = ssub.s32 256, 256
      %283 = vsyncadd [#allocation4], %s282
      %s284 = sshll.u32 [#allocation3], 4
      %s285 = int_to_ptr.vmem [resolvable:$true] %s284
      %290 = dma.vmem_to_hbm [thread:$0]  %s285, 256, %s8, [#allocation4], 128, 128, 8
    $region37: #{tpu_custom_call.1} parent=1 // pred_fallthru
      _
    // Predicated region
    $region38: #{tpu_custom_call.1} parent=1 // pred_check
      _
    $region39: #{tpu_custom_call.1} parent=1 // pred_check_branch
      %292 = sbr.rel (0) target = $region41
    $region40: #{tpu_custom_call.1} parent=1 // pred_region
      %293 = dma.done [#allocation4], 256
    $region41: #{tpu_custom_call.1} parent=1 // pred_fallthru
      _
    %294 = vsyncpa [#allocation4], 1

</llo_original>
